<compile_context>
chip_gen: v5e
topology: v5e:2x2
jax: 0.10.0
libtpu: 0.0.40
codegen_flags: <defaults>
</compile_context>

<pallas_src>
import math
from typing import Optional

import jax
import jax.numpy as jnp
from jax.experimental import pallas as pl
from jax.experimental.pallas import tpu as pltpu


def _round_up(v: int, m: int) -> int:
    return ((v + m - 1) // m) * m


def _pick_tile(padded_dim: int, desired: int, align: int) -> int:
    """Largest multiple of `align` that divides `padded_dim` and is <= desired."""
    units = padded_dim // align
    max_units = max(1, min(units, desired // align))
    for d in range(max_units, 0, -1):
        if units % d == 0:
            return d * align
    return align


def _vmem_capacity_bytes() -> int:
    """Physical per-TensorCore VMEM; conservative v7x fallback if query fails."""
    try:
        cap = getattr(pltpu.get_tpu_info(), "vmem_capacity_bytes", None)
        if cap:
            return int(cap)
    except Exception:
        pass
    return 64 * 1024 * 1024


# ----------------------------- kernels ------------------------------------ #

def _cpl_kernel_whole_k(x_ref, w_ref, b_ref, o_ref):
    """Whole-K path: one MXU pass per output tile, bias fused in the epilogue.

    x_ref: (tm, Kp)   w_ref: (Kp, tn)   b_ref: (1, tn) f32   o_ref: (tm, tn)
    """
    acc = jnp.dot(x_ref[...], w_ref[...], preferred_element_type=jnp.float32)
    o_ref[...] = (acc + b_ref[...]).astype(o_ref.dtype)


def _cpl_kernel_tiled_k(x_ref, w_ref, b_ref, o_ref, acc_ref):
    """Tiled-K path: output-stationary f32 accumulator, K innermost ("arbitrary").

    x_ref: (tm, tk)   w_ref: (tk, tn)   b_ref: (1, tn) f32
    o_ref: (tm, tn)   acc_ref: (tm, tn) f32 VMEM scratch
    """
    k = pl.program_id(3)

    @pl.when(k == 0)
    def _init():
        # Fold bias into the accumulator init.
        acc_ref[...] = jnp.broadcast_to(b_ref[...].astype(jnp.float32),
                                        acc_ref.shape)

    acc_ref[...] += jnp.dot(x_ref[...], w_ref[...],
                            preferred_element_type=jnp.float32)

    @pl.when(k == pl.num_programs(3) - 1)
    def _store():
        o_ref[...] = acc_ref[...].astype(o_ref.dtype)


# ----------------------------- wrapper ------------------------------------ #

def column_parallel_linear(x, weight_shards, bias_shards, *,
                           gather_output: bool = True,
                           compute_dtype=jnp.bfloat16,
                           out_dtype=None,
                           tm: int = 512, tn: int = 512, tk: int = 2048,
                           whole_k: Optional[bool] = None,
                           weight_buffers: Optional[int] = None):
    """x:             (..., in_features)
       weight_shards: (world_size, out_per_partition, in_features)   (torch layout)
       bias_shards:   (world_size, out_per_partition)

    compute_dtype defaults to bf16 (MXU peak on every TPU generation) with f32
    accumulation inside the kernel; pass jnp.float32 for bit-accurate f32.
    `whole_k=None` auto-selects the collapsed-K fast path when it fits VMEM.
    `weight_buffers=3` deepens the weight-stream pipeline (decode regime, v7x).
    """
    world_size, out_pp, in_features = weight_shards.shape
    assert x.shape[-1] == in_features
    lead_shape = x.shape[:-1]
    M = int(math.prod(lead_shape)) if lead_shape else 1
    out_dtype = x.dtype if out_dtype is None else out_dtype

    if compute_dtype is not None:
        x = x.astype(compute_dtype)
        weight_shards = weight_shards.astype(compute_dtype)

    x2d = x.reshape(M, in_features)
    # One-time layout change (amortized across every grid step): (ws, N_pp, K)
    # -> (ws, K, N_pp) so the kernel contracts canonically with no XLU transpose.
    w_t = jnp.swapaxes(weight_shards, 1, 2)

    x_isz = x2d.dtype.itemsize
    w_isz = w_t.dtype.itemsize
    o_isz = jnp.dtype(out_dtype).itemsize

    # ---- minimal lane/sublane-aligned padding, then tiles that divide it ----
    Kp = _round_up(in_features, 128)
    Np = _round_up(out_pp, 128)
    Mr = _round_up(M, 16)

    # ---- generation-aware VMEM budget ----
    vmem_cap = _vmem_capacity_bytes()              # 128 MiB v5e/v6e, 64 MiB v7x
    vmem_limit_cap = int(vmem_cap * 0.9)           # headroom for compiler scratch
    tile_budget = int(vmem_limit_cap * 0.85)       # double-buffered working set

    tm = max(8, (min(tm, Mr) // 8) * 8)
    tn = _pick_tile(Np, tn, 128)

    def working_set(tm_, tn_, tk_, whole):
        buf = 2 * (tm_ * tk_ * x_isz + tk_ * tn_ * w_isz + tn_ * 4
                   + tm_ * tn_ * o_isz)
        return buf + (0 if whole else tm_ * tn_ * 4)

    if whole_k is None:
        whole_k = working_set(tm, tn, Kp, True) <= tile_budget
    if whole_k:
        tk = Kp
    else:
        tk = _pick_tile(Kp, tk, 128)
        while working_set(tm, tn, tk, False) > tile_budget and tk > 128:
            tk = _pick_tile(Kp, tk // 2, 128)
        while working_set(tm, tn, tk, False) > tile_budget and tm > 8:
            tm = max(8, (tm // 2 // 8) * 8)

    Mp = _round_up(M, tm)

    # Zero-padding is exact: extra K contributes 0, extra M/N is sliced off below.
    if (Mp, Kp) != (M, in_features):
        x2d = jnp.pad(x2d, ((0, Mp - M), (0, Kp - in_features)))
    if (Kp, Np) != (in_features, out_pp):
        w_t = jnp.pad(w_t, ((0, 0), (0, Kp - in_features), (0, Np - out_pp)))
    b = jnp.pad(bias_shards.astype(jnp.float32), ((0, 0), (0, Np - out_pp)))
    b = b.reshape(world_size, 1, Np)

    n_i, n_j, n_k = Mp // tm, Np // tn, Kp // tk
    out_features = world_size * out_pp

    w_spec_kwargs = {}
    if weight_buffers is not None:
        w_spec_kwargs["pipeline_mode"] = pl.Buffered(int(weight_buffers))

    # Traffic under the actual schedule: each rank's weight shard streams once
    # per i-tile; activations stream once per rank (whole-K) or per (rank, j).
    x_reads = world_size * (1 if whole_k else n_j)
    cost = pl.CostEstimate(
        flops=2 * M * in_features * out_features,
        bytes_accessed=int(x_reads * Mp * Kp * x_isz
                           + n_i * world_size * Np * Kp * w_isz
                           + n_i * world_size * Np * 4
                           + Mp * world_size * Np * o_isz),
        transcendentals=0,
    )
    out_shape = jax.ShapeDtypeStruct((Mp, world_size * Np), out_dtype)

    if whole_k:
        grid = (world_size, n_i, n_j)
        grid_spec = pltpu.PrefetchScalarGridSpec(
            num_scalar_prefetch=0,
            grid=grid,
            in_specs=[
                # activations: (tm, Kp); block index constant across (r, j)
                pl.BlockSpec((tm, Kp), lambda r, i, j: (i, 0)),
                # weight shard for rank r, (Kp, tn); rank dim squeezed
                pl.BlockSpec((None, Kp, tn), lambda r, i, j: (r, 0, j),
                             **w_spec_kwargs),
                # bias shard for rank r
                pl.BlockSpec((None, 1, tn), lambda r, i, j: (r, 0, j)),
            ],
            # Write the gathered layout directly: rank r's j-th N-tile lands at
            # column block r*n_j + j of the full (Mp, ws*Np) output.
            out_specs=pl.BlockSpec((tm, tn), lambda r, i, j: (i, r * n_j + j)),
        )
        kernel = _cpl_kernel_whole_k
        dim_sem = ("parallel", "parallel", "parallel")
        ws_bytes = working_set(tm, tn, Kp, True)
    else:
        grid = (world_size, n_i, n_j, n_k)
        grid_spec = pltpu.PrefetchScalarGridSpec(
            num_scalar_prefetch=0,
            grid=grid,
            in_specs=[
                pl.BlockSpec((tm, tk), lambda r, i, j, k: (i, k)),
                pl.BlockSpec((None, tk, tn), lambda r, i, j, k: (r, k, j),
                             **w_spec_kwargs),
                pl.BlockSpec((None, 1, tn), lambda r, i, j, k: (r, 0, j)),
            ],
            out_specs=pl.BlockSpec((tm, tn),
                                   lambda r, i, j, k: (i, r * n_j + j)),
            scratch_shapes=[pltpu.VMEM((tm, tn), jnp.float32)],
        )
        kernel = _cpl_kernel_tiled_k
        dim_sem = ("parallel", "parallel", "parallel", "arbitrary")
        ws_bytes = working_set(tm, tn, tk, False)

    vmem_limit = int(min(vmem_limit_cap, max(32 << 20, ws_bytes + (8 << 20))))

    out2d = pl.pallas_call(
        kernel,
        out_shape=out_shape,
        grid_spec=grid_spec,
        compiler_params=pltpu.CompilerParams(
            dimension_semantics=dim_sem,
            vmem_limit_bytes=vmem_limit),
        cost_estimate=cost,
    )(x2d, w_t, b)

    # Strip padding.  If Np == out_pp (typical production case) the kernel's
    # output is already the gathered layout and this is a pure row slice.
    if Np == out_pp:
        gathered = out2d[:M]
    else:
        gathered = (out2d[:M]
                    .reshape(M, world_size, Np)[:, :, :out_pp]
                    .reshape(M, out_features))

    if gather_output:
        # gather_from_model_parallel_region: concat per-rank outputs on last dim
        return gathered.reshape(*lead_shape, out_features)
    # gather_output=False: every rank keeps its own shard; single-host
    # simulation returns the stacked shards (rank-major).
    shards = jnp.moveaxis(gathered.reshape(M, world_size, out_pp), 1, 0)
    return shards.reshape(world_size, *lead_shape, out_pp)

# TODO(synk): fp8 weight path with per-channel scales (v7x) not implemented.


def init_params(key, in_features, out_features, world_size, dtype=jnp.float32):
    """Deterministic synthetic init mimicking xavier_normal_ on the master
    weight (out_features, in_features), bias = 0, partitioned along the output
    dim across `world_size` ranks (affine_weight along dim 0)."""
    std = math.sqrt(2.0 / (in_features + out_features))
    w_master = std * jax.random.normal(key, (out_features, in_features), dtype=dtype)
    b_master = jnp.zeros((out_features,), dtype=dtype)
    out_pp = out_features // world_size
    w_shards = w_master.reshape(world_size, out_pp, in_features)
    b_shards = b_master.reshape(world_size, out_pp)
    return w_master, b_master, w_shards, b_shards


if __name__ == "__main__":
    key = jax.random.PRNGKey(0)
    k_x, k_w, k_x2, k_w2 = jax.random.split(key, 4)

    # --- test 1: small shapes (exercise padding), exact f32 compute ---
    batch, seq, in_features, out_features, world_size = 2, 8, 32, 64, 2
    x = jax.random.normal(k_x, (batch, seq, in_features), dtype=jnp.float32)
    w_master, b_master, w_shards, b_shards = init_params(
        k_w, in_features, out_features, world_size)

    out = column_parallel_linear(x, w_shards, b_shards, gather_output=True,
                                 compute_dtype=jnp.float32)
    out = jax.block_until_ready(out)
    ref = jnp.einsum("bsk,nk->bsn", x, w_master,
                     precision=jax.lax.Precision.HIGHEST) + b_master
    assert out.shape == (batch, seq, out_features), out.shape
    assert jnp.allclose(out, ref, atol=1e-4, rtol=1e-4), \
        float(jnp.max(jnp.abs(out - ref)))

    # gather_output=False path: stacked per-rank shards
    out_shards = column_parallel_linear(x, w_shards, b_shards,
                                        gather_output=False,
                                        compute_dtype=jnp.float32)
    out_shards = jax.block_until_ready(out_shards)
    out_pp = out_features // world_size
    ref_shards = jnp.moveaxis(ref.reshape(batch, seq, world_size, out_pp), 2, 0)
    assert out_shards.shape == (world_size, batch, seq, out_pp), out_shards.shape
    assert jnp.allclose(out_shards, ref_shards, atol=1e-4, rtol=1e-4)

    # --- test 2: lane-aligned shapes, 4 ranks, f32, FORCED tiled-K path ---
    b2, s2, in2, out2, ws2 = 2, 64, 1024, 512, 4
    x2 = jax.random.normal(k_x2, (b2, s2, in2), dtype=jnp.float32)
    w_master2, b_master2, w_shards2, b_shards2 = init_params(k_w2, in2, out2, ws2)

    out_2 = column_parallel_linear(x2, w_shards2, b_shards2, gather_output=True,
                                   compute_dtype=jnp.float32,
                                   whole_k=False, tk=256)
    out_2 = jax.block_until_ready(out_2)
    ref_2 = jnp.einsum("bsk,nk->bsn", x2, w_master2,
                       precision=jax.lax.Precision.HIGHEST) + b_master2
    assert out_2.shape == (b2, s2, out2), out_2.shape
    assert jnp.allclose(out_2, ref_2, atol=2e-3, rtol=2e-3), \
        float(jnp.max(jnp.abs(out_2 - ref_2)))

    # --- test 3: default bf16 compute path (whole-K), f32 accumulation ---
    out_3 = column_parallel_linear(x2, w_shards2, b_shards2, gather_output=True)
    out_3 = jax.block_until_ready(out_3)
    x2_bf = x2.astype(jnp.bfloat16).astype(jnp.float32)
    w2_bf = w_master2.astype(jnp.bfloat16).astype(jnp.float32)
    ref_3 = jnp.einsum("bsk,nk->bsn", x2_bf, w2_bf,
                       precision=jax.lax.Precision.HIGHEST) + b_master2
    assert out_3.shape == (b2, s2, out2), out_3.shape
    assert jnp.allclose(out_3, ref_3, atol=5e-3, rtol=5e-3), \
        float(jnp.max(jnp.abs(out_3 - ref_3)))

    print("KERNEL_OK")
</pallas_src>

<mosaic_0001>
module attributes {stable_mosaic.version = 11 : i64} {
  func.func @_cpl_kernel_whole_k(%arg0: i32, %arg1: i32, %arg2: i32, %arg3: memref<16x128xf32, #tpu.memory_space<vmem>>, %arg4: memref<1x128x128xf32, #tpu.memory_space<vmem>>, %arg5: memref<1x1x128xf32, #tpu.memory_space<vmem>>, %arg6: memref<16x128xf32, #tpu.memory_space<vmem>>) attributes {dimension_semantics = [#tpu.dimension_semantics<parallel>, #tpu.dimension_semantics<parallel>, #tpu.dimension_semantics<parallel>], iteration_bounds = array<i64: 2, 1, 1>, scalar_prefetch = 0 : i64, scratch_operands = 0 : i64, tpu.core_type = #tpu.core_type<tc>, window_params = [{transform_indices = @transform_0, window_bounds = array<i64: 16, 128>}, {transform_indices = @transform_1, window_bounds = array<i64: 1, 128, 128>}, {transform_indices = @transform_2, window_bounds = array<i64: 1, 1, 128>}, {transform_indices = @transform_3, window_bounds = array<i64: 16, 128>}]} {
    %c0 = arith.constant 0 : index
    %c0_0 = arith.constant 0 : index
    %0 = vector.load %arg3[%c0, %c0_0] : memref<16x128xf32, #tpu.memory_space<vmem>>, vector<16x128xf32>
    %c0_1 = arith.constant 0 : index
    %c0_2 = arith.constant 0 : index
    %c0_3 = arith.constant 0 : index
    %1 = vector.load %arg4[%c0_1, %c0_2, %c0_3] : memref<1x128x128xf32, #tpu.memory_space<vmem>>, vector<1x128x128xf32>
    %2 = vector.shape_cast %1 : vector<1x128x128xf32> to vector<128x128xf32>
    %cst = arith.constant dense<0.000000e+00> : vector<16x128xf32>
    %3 = tpu.matmul %0, %2, %cst {dimension_numbers = #tpu.dot_dimension_numbers<[1], [0], [0], [1], [0, 0, 1, 1], [], []>} : vector<16x128xf32>, vector<128x128xf32>, vector<16x128xf32> -> vector<16x128xf32>
    %c0_4 = arith.constant 0 : index
    %c0_5 = arith.constant 0 : index
    %c0_6 = arith.constant 0 : index
    %4 = vector.load %arg5[%c0_4, %c0_5, %c0_6] : memref<1x1x128xf32, #tpu.memory_space<vmem>>, vector<1x1x128xf32>
    %5 = vector.shape_cast %4 : vector<1x1x128xf32> to vector<1x128xf32>
    %6 = vector.broadcast %5 : vector<1x128xf32> to vector<16x128xf32>
    %7 = arith.addf %3, %6 : vector<16x128xf32>
    %c0_7 = arith.constant 0 : index
    %c0_8 = arith.constant 0 : index
    %8 = vector.load %arg6[%c0_7, %c0_8] : memref<16x128xf32, #tpu.memory_space<vmem>>, vector<16x128xf32>
    tpu.vector_store %arg6[%c0_7, %c0_8], %7 {strides = array<i32>} : memref<16x128xf32, #tpu.memory_space<vmem>>, vector<16x128xf32>,
    return
  }
  func.func @transform_0(%arg0: i32, %arg1: i32, %arg2: i32) -> (i32, i32) {
    %c0_i32 = arith.constant 0 : i32
    %c0_i32_0 = arith.constant 0 : i32
    return %arg1, %c0_i32 : i32, i32
  }
  func.func @transform_1(%arg0: i32, %arg1: i32, %arg2: i32) -> (i32, i32, i32) {
    %c0_i32 = arith.constant 0 : i32
    %c0_i32_0 = arith.constant 0 : i32
    return %arg0, %c0_i32, %arg2 : i32, i32, i32
  }
  func.func @transform_2(%arg0: i32, %arg1: i32, %arg2: i32) -> (i32, i32, i32) {
    %c0_i32 = arith.constant 0 : i32
    %c0_i32_0 = arith.constant 0 : i32
    return %arg0, %c0_i32, %arg2 : i32, i32, i32
  }
  func.func @transform_3(%arg0: i32, %arg1: i32, %arg2: i32) -> (i32, i32) {
    %c1_i32 = arith.constant 1 : i32
    %0 = arith.muli %arg0, %c1_i32 : i32
    %1 = arith.addi %0, %arg2 : i32
    %c0_i32 = arith.constant 0 : i32
    return %arg1, %1 : i32, i32
  }
}

</mosaic_0001>

<llo_original>
// kernel: tpu_custom_call.1
$region0: #{tpu_custom_call.1}
  #allocation0 [shape = 'u32[]', space=smem, size = 0x4, offset = 0x4, fixed_abs, tag = 'smem constant byte address 0x4 - core index']
  #allocation1 [shape = 'u32[72,128]{1,0:T(1,128)}', space=vmem, size = 0x9000, scoped, tag = 'internal scratch']
  %s0 = inlined_call_operand.hbm [shape: f32[16,128], index: 0, kind: input, shape index: {}]
  %s1 = inlined_call_operand.hbm [shape: f32[2,128,128], index: 1, kind: input, shape index: {}]
  %s2 = inlined_call_operand.hbm [shape: f32[2,1,128], index: 2, kind: input, shape index: {}]
  %s3 = inlined_call_operand.hbm [shape: f32[16,256], index: 3, kind: output, shape index: {}]
  %s4 = sld [smem:[#allocation0]]
  $region57: #{tpu_custom_call.1} parent=0
    _
  %s6 = ssub.s32 1, %s4
  %s7 = scalar_select 0, %s6, %s4
  $region1: #{tpu_custom_call.1} parent=0
    #allocation2 [shape = 'u8[8192]{0}', space=vmem, size = 0x2000, scoped, tag = 'input window, operand 0, single buffered']
    #allocation3 [shape = 's32[2]{0}', space=sflag, size = 0x8, scoped, tag = 'scoped memory for tpu_custom_call.1']
    #allocation4 [shape = 's32[2]{0}', space=sflag, size = 0x8, scoped, tag = 'scoped memory for tpu_custom_call.1']
    #allocation5 [shape = 'u8[131072]{0}', space=vmem, size = 0x20000, scoped, tag = 'input window, operand 1']
    #allocation6 [shape = 's32[2]{0}', space=sflag, size = 0x8, scoped, tag = 'scoped memory for tpu_custom_call.1']
    #allocation7 [shape = 'u8[1024]{0}', space=vmem, size = 0x400, scoped, tag = 'input window, operand 2']
    #allocation8 [shape = 'u8[16384]{0}', space=vmem, size = 0x4000, scoped, tag = 'output window, operand 0']
    %8 = vsyncpa [#allocation3], 0
    %9 = vsyncpa [#allocation6], 0
    %s10 = scalar_lea.sflag [#allocation6], 1
    %11 = vsyncpa %s10, 0
    %12 = vsyncpa [#allocation4], 0
    %s13 = scalar_lea.sflag [#allocation4], 1
    %14 = vsyncpa %s13, 0
    loop: start=0, step=1, limit=4
    $region2: #{tpu_custom_call.1} parent=1 // loop_pre_header
      _
    $region3: #{tpu_custom_call.1} parent=1 // loop_header
      %s16 = sphi 0, %s20
      %p17 = scmp.ge.s32.totalorder %s16, 4
      %s23 = sphi 0, %s42
      %s24 = sphi 0, %s38
      %s25 = sphi 0, %s34
      %s26 = sphi 0, %s23
      %s27 = sphi 0, %s24
      %s28 = sphi 0, %s25
      %s29 = sphi 0, %s26
      %s30 = sphi 0, %s27
      %s31 = sphi 0, %s28
      %s45 = sphi 0, %s47
      %s48 = sphi 0, %s45
      %s49 = sphi 0, %s48
      %s65 = sphi 0, %s49
      %s73 = sphi 0, %s75
      %s76 = sphi 0, %s73
      %s77 = sphi 0, %s76
      %s93 = sphi 0, %s77
      %s101 = sphi 0, %s103
      %s104 = sphi 0, %s101
      %s105 = sphi 0, %s104
      %s121 = sphi 0, %s105
      %s131 = sphi 0, %s133
      %s134 = sphi 0, %s131
      %s135 = sphi 0, %s134
      %s151 = sphi 0, %s135
    $region4: #{tpu_custom_call.1} parent=1 // loop_header_branch
      %19 = sbr.rel (%p17) target = $region8
    $region5: #{tpu_custom_call.1} parent=1 // loop_body
      %s21 = ssub.s32 %s16, 1
      %s22 = ssub.s32 %s16, 2
      %s32 = sadd.s32 1, %s25
      %p33 = scmp.ge.s32.totalorder %s32, 1
      %s34 = scalar_select %p33, 0, %s32
      %s35 = sadd.s32 1, %s24
      %s36 = scalar_select %p33, %s35, %s24
      %p37 = scmp.ge.s32.totalorder %s36, 1
      %s38 = scalar_select %p37, 0, %s36
      %s39 = sadd.s32 1, %s23
      %s40 = scalar_select %p37, %s39, %s23
      %p41 = scmp.ge.s32.totalorder %s40, 2
      %s42 = scalar_select %p41, 0, %s40
      %s43 = ssub.s32 %s24, %s38
      %p44 = scmp.eq.s32.totalorder %s43, 0
      %s46 = sadd.s32 %s45, 1
      %s47 = scalar_select %p44, %s45, %s46
      %p50 = pneg %p44
      %p51 = scmp.eq.s32.totalorder %s16, 1
      %p52 = por %p50, %p51
      %p53 = scmp.ne.s32.totalorder %s45, %s48
      %p54 = scmp.eq.s32.totalorder %s16, 0
      %p55 = por %p53, %p54
      %p56 = scmp.ne.s32.totalorder %s45, %s48
      %p57 = scmp.eq.s32.totalorder %s21, 1
      %p58 = por %p56, %p57
      %p59 = scmp.ne.s32.totalorder %s48, %s49
      %p60 = scmp.eq.s32.totalorder %s21, 0
      %p61 = por %p59, %p60
      %p62 = scmp.ne.s32.totalorder %s48, %s49
      %p63 = scmp.eq.s32.totalorder %s22, 1
      %p64 = por %p62, %p63
      %p66 = scmp.ne.s32.totalorder %s49, %s65
      %p67 = scmp.eq.s32.totalorder %s22, 0
      %p68 = por %p66, %p67
      %s69 = ssub.s32 %s23, %s42
      %s70 = ssub.s32 %s25, %s34
      %s71 = sor.u32 %s69, %s70
      %p72 = scmp.eq.s32.totalorder %s71, 0
      %s74 = sadd.s32 %s73, 1
      %s75 = scalar_select %p72, %s73, %s74
      %p78 = pneg %p72
      %p79 = scmp.eq.s32.totalorder %s16, 1
      %p80 = por %p78, %p79
      %p81 = scmp.ne.s32.totalorder %s73, %s76
      %p82 = scmp.eq.s32.totalorder %s16, 0
      %p83 = por %p81, %p82
      %p84 = scmp.ne.s32.totalorder %s73, %s76
      %p85 = scmp.eq.s32.totalorder %s21, 1
      %p86 = por %p84, %p85
      %p87 = scmp.ne.s32.totalorder %s76, %s77
      %p88 = scmp.eq.s32.totalorder %s21, 0
      %p89 = por %p87, %p88
      %p90 = scmp.ne.s32.totalorder %s76, %s77
      %p91 = scmp.eq.s32.totalorder %s22, 1
      %p92 = por %p90, %p91
      %p94 = scmp.ne.s32.totalorder %s77, %s93
      %p95 = scmp.eq.s32.totalorder %s22, 0
      %p96 = por %p94, %p95
      %s97 = ssub.s32 %s23, %s42
      %s98 = ssub.s32 %s25, %s34
      %s99 = sor.u32 %s97, %s98
      %p100 = scmp.eq.s32.totalorder %s99, 0
      %s102 = sadd.s32 %s101, 1
      %s103 = scalar_select %p100, %s101, %s102
      %p106 = pneg %p100
      %p107 = scmp.eq.s32.totalorder %s16, 1
      %p108 = por %p106, %p107
      %p109 = scmp.ne.s32.totalorder %s101, %s104
      %p110 = scmp.eq.s32.totalorder %s16, 0
      %p111 = por %p109, %p110
      %p112 = scmp.ne.s32.totalorder %s101, %s104
      %p113 = scmp.eq.s32.totalorder %s21, 1
      %p114 = por %p112, %p113
      %p115 = scmp.ne.s32.totalorder %s104, %s105
      %p116 = scmp.eq.s32.totalorder %s21, 0
      %p117 = por %p115, %p116
      %p118 = scmp.ne.s32.totalorder %s104, %s105
      %p119 = scmp.eq.s32.totalorder %s22, 1
      %p120 = por %p118, %p119
      %p122 = scmp.ne.s32.totalorder %s105, %s121
      %p123 = scmp.eq.s32.totalorder %s22, 0
      %p124 = por %p122, %p123
      %s125 = sadd.s32 %s23, %s25
      %s126 = sadd.s32 %s42, %s34
      %s127 = ssub.s32 %s24, %s38
      %s128 = ssub.s32 %s125, %s126
      %s129 = sor.u32 %s127, %s128
      %p130 = scmp.eq.s32.totalorder %s129, 0
      %s132 = sadd.s32 %s131, 1
      %s133 = scalar_select %p130, %s131, %s132
      %p136 = pneg %p130
      %p137 = scmp.eq.s32.totalorder %s16, 1
      %p138 = por %p136, %p137
      %p139 = scmp.ne.s32.totalorder %s131, %s134
      %p140 = scmp.eq.s32.totalorder %s16, 0
      %p141 = por %p139, %p140
      %p142 = scmp.ne.s32.totalorder %s131, %s134
      %p143 = scmp.eq.s32.totalorder %s21, 1
      %p144 = por %p142, %p143
      %p145 = scmp.ne.s32.totalorder %s134, %s135
      %p146 = scmp.eq.s32.totalorder %s21, 0
      %p147 = por %p145, %p146
      %p148 = scmp.ne.s32.totalorder %s134, %s135
      %p149 = scmp.eq.s32.totalorder %s22, 1
      %p150 = por %p148, %p149
      %p152 = scmp.ne.s32.totalorder %s135, %s151
      %p153 = scmp.eq.s32.totalorder %s22, 0
      %p154 = por %p152, %p153
      %p155 = scmp.le.s32.totalorder 1, %s16
      %p156 = scmp.lt.s32.totalorder %s16, 3
      %p157 = pnand %p155, %p156
      %p158 = pneg %p157
      // Predicated region
      $region9: #{tpu_custom_call.1} parent=5 // pred_check
        _
      $region10: #{tpu_custom_call.1} parent=5 // pred_check_branch
        %160 = sbr.rel (%p157) target = $region12
      $region11: #{tpu_custom_call.1} parent=5 // pred_region
        %s161 = ssub.s32 %s16, 1
        // Predicated region
        $region13: #{tpu_custom_call.1} parent=11 // pred_check
          %p162 = pneg %p61
        $region14: #{tpu_custom_call.1} parent=11 // pred_check_branch
          %164 = sbr.rel (%p162) target = $region16
        $region15: #{tpu_custom_call.1} parent=11 // pred_region
          %s165 = smul.u32 2, %s27
          %167 = vsyncadd [#allocation3], 0
          %s168 = smul.addr %s165, 8
          %s169 = scalar_lea.hbm %s0, %s168
          %s170 = sshll.u32 %s169, 4
          %s171 = int_to_ptr.hbm [resolvable:$true] %s170
          %s172 = sshll.u32 [#allocation2], 4
          %s173 = int_to_ptr.vmem [resolvable:$true] %s172
          %178 = dma.hbm_to_vmem [thread:$0]  %s171, 256, %s173, [#allocation3], 128, 128, 8
        $region16: #{tpu_custom_call.1} parent=11 // pred_fallthru
          _
      $region12: #{tpu_custom_call.1} parent=5 // pred_fallthru
        _
      %p179 = scmp.lt.s32.totalorder %s16, 2
      // Predicated region
      $region17: #{tpu_custom_call.1} parent=5 // pred_check
        %p180 = pneg %p179
      $region18: #{tpu_custom_call.1} parent=5 // pred_check_branch
        %182 = sbr.rel (%p180) target = $region20
      $region19: #{tpu_custom_call.1} parent=5 // pred_region
        // Predicated region
        $region21: #{tpu_custom_call.1} parent=19 // pred_check
          %p183 = pneg %p83
        $region22: #{tpu_custom_call.1} parent=19 // pred_check_branch
          %185 = sbr.rel (%p183) target = $region24
        $region23: #{tpu_custom_call.1} parent=19 // pred_region
          %s186 = sand.u32 %s16, 1
          %s187 = scalar_lea.sflag [#allocation6], %s186
          %s188 = sand.u32 %s73, 1
          %s189 = smul.addr %s188, 128
          %s190 = scalar_lea.vmem [#allocation5], %s189
          %192 = vsyncadd %s187, 0
          %s193 = smul.addr %s23, 16
          %s194 = sadd.s32 %s25, %s193
          %s195 = smul.addr %s194, 8
          %s196 = scalar_lea.hbm %s1, %s195
          %s197 = sshll.u32 %s196, 4
          %s198 = int_to_ptr.hbm [resolvable:$true] %s197
          %s199 = sshll.u32 %s190, 4
          %s200 = int_to_ptr.vmem [resolvable:$true] %s199
          %205 = dma.hbm_to_vmem [thread:$0]  %s198, 2048, %s200, %s187, 128, 128, 8
        $region24: #{tpu_custom_call.1} parent=19 // pred_fallthru
          _
        // Predicated region
        $region25: #{tpu_custom_call.1} parent=19 // pred_check
          %p206 = pneg %p111
        $region26: #{tpu_custom_call.1} parent=19 // pred_check_branch
          %208 = sbr.rel (%p206) target = $region28
        $region27: #{tpu_custom_call.1} parent=19 // pred_region
          %s209 = sand.u32 %s16, 1
          %s210 = scalar_lea.sflag [#allocation6], %s209
          %s211 = sand.u32 %s101, 1
          %s212 = scalar_lea.vmem [#allocation7], %s211
          %214 = vsyncadd %s210, 0
          %s215 = sadd.s32 %s25, %s23
          %s216 = scalar_lea.hbm %s2, %s215
          %s218 = sshll.u32 %s216, 4
          %s219 = int_to_ptr.hbm [resolvable:$true] %s218
          %s220 = sshll.u32 %s212, 4
          %s221 = int_to_ptr.vmem [resolvable:$true] %s220
          %223 = dma.hbm_to_vmem [thread:$0]  %s219, 16, %s221, %s210
        $region28: #{tpu_custom_call.1} parent=19 // pred_fallthru
          _
      $region20: #{tpu_custom_call.1} parent=5 // pred_fallthru
        _
      %p224 = scmp.le.s32.totalorder 1, %s16
      %p225 = scmp.lt.s32.totalorder %s16, 3
      %p226 = pnand %p224, %p225
      %p227 = pneg %p226
      // Predicated region
      $region29: #{tpu_custom_call.1} parent=5 // pred_check
        _
      $region30: #{tpu_custom_call.1} parent=5 // pred_check_branch
        %229 = sbr.rel (%p226) target = $region32
      $region31: #{tpu_custom_call.1} parent=5 // pred_region
        %s230 = ssub.s32 %s16, 1
        // Predicated region
        $region33: #{tpu_custom_call.1} parent=31 // pred_check
          %p231 = pneg %p61
        $region34: #{tpu_custom_call.1} parent=31 // pred_check_branch
          %233 = sbr.rel (%p231) target = $region36
        $region35: #{tpu_custom_call.1} parent=31 // pred_region
          %235 = dma.done [#allocation3], 256
        $region36: #{tpu_custom_call.1} parent=31 // pred_fallthru
          _
        %s236 = sand.u32 %s21, 1
        %s237 = scalar_lea.sflag [#allocation6], %s236
        %s238 = sand.u32 %s76, 1
        %s239 = smul.addr %s238, 128
        %s240 = scalar_lea.vmem [#allocation5], %s239
        // Predicated region
        $region37: #{tpu_custom_call.1} parent=31 // pred_check
          %p241 = pneg %p89
        $region38: #{tpu_custom_call.1} parent=31 // pred_check_branch
          %243 = sbr.rel (%p241) target = $region40
        $region39: #{tpu_custom_call.1} parent=31 // pred_region
          %245 = dma.done %s237, 2048
        $region40: #{tpu_custom_call.1} parent=31 // pred_fallthru
          _
        %s246 = sand.u32 %s21, 1
        %s247 = scalar_lea.sflag [#allocation6], %s246
        %s248 = sand.u32 %s104, 1
        %s249 = scalar_lea.vmem [#allocation7], %s248
        // Predicated region
        $region41: #{tpu_custom_call.1} parent=31 // pred_check
          %p250 = pneg %p117
        $region42: #{tpu_custom_call.1} parent=31 // pred_check_branch
          %252 = sbr.rel (%p250) target = $region44
        $region43: #{tpu_custom_call.1} parent=31 // pred_region
          %254 = dma.done %s247, 16
        $region44: #{tpu_custom_call.1} parent=31 // pred_fallthru
          _
        %p255 = pneg %p61
        %p256 = pneg %p58
        %s257 = sand.u32 %s21, 1
        %s258 = scalar_lea.sflag [#allocation6], %s257
        %s259 = sand.u32 %s76, 1
        %s260 = smul.addr %s259, 128
        %s261 = scalar_lea.vmem [#allocation5], %s260
        %p262 = pneg %p89
        %p263 = pneg %p86
        %s264 = sand.u32 %s21, 1
        %s265 = scalar_lea.sflag [#allocation6], %s264
        %s266 = sand.u32 %s104, 1
        %s267 = scalar_lea.vmem [#allocation7], %s266
        %p268 = pneg %p117
        %p269 = pneg %p114
        %p270 = pneg %p147
        %p271 = pneg %p144
        %s272 = sand.u32 %s134, 1
        %s273 = scalar_lea.sflag [#allocation4], %s272
        %s274 = sand.u32 %s134, 1
        %s275 = smul.addr %s274, 16
        %s276 = scalar_lea.vmem [#allocation8], %s275
        %s277 = smul.u32 2, %s27
        %s278 = sadd.s32 %s26, %s28
        %s279 = smul.u32 2, %s27
        %v280 = vld [vmem:[#allocation2] sm:$0xff]
        %v281 = vld [vmem:[#allocation2 + $0x8] sm:$0xff]
        %v282 = vld [vmem:[%s240] sm:$0xff]
        %v283 = vld [vmem:[%s240 + $0x8] sm:$0xff]
        %v284 = vld [vmem:[%s240 + $0x10] sm:$0xff]
        %v285 = vld [vmem:[%s240 + $0x18] sm:$0xff]
        %v286 = vld [vmem:[%s240 + $0x20] sm:$0xff]
        %v287 = vld [vmem:[%s240 + $0x28] sm:$0xff]
        %v288 = vld [vmem:[%s240 + $0x30] sm:$0xff]
        %v289 = vld [vmem:[%s240 + $0x38] sm:$0xff]
        %v290 = vld [vmem:[%s240 + $0x40] sm:$0xff]
        %v291 = vld [vmem:[%s240 + $0x48] sm:$0xff]
        %v292 = vld [vmem:[%s240 + $0x50] sm:$0xff]
        %v293 = vld [vmem:[%s240 + $0x58] sm:$0xff]
        %v294 = vld [vmem:[%s240 + $0x60] sm:$0xff]
        %v295 = vld [vmem:[%s240 + $0x68] sm:$0xff]
        %v296 = vld [vmem:[%s240 + $0x70] sm:$0xff]
        %v297 = vld [vmem:[%s240 + $0x78] sm:$0xff]
        %v298 = vld [vmem:[%s249] sm:$0x1]
        %v300 = vperm.slane %v298, 0
        %302 = vmatpush.msra.mxu0 %v297
        %303 = vmatpush.msra.mxu0 %v296
        %304 = vmatpush.msra.mxu0 %v295
        %305 = vmatpush.msra.mxu0 %v294
        %306 = vmatpush.msra.mxu0 %v293
        %307 = vmatpush.msra.mxu0 %v292
        %308 = vmatpush.msra.mxu0 %v291
        %309 = vmatpush.msra.mxu0 %v290
        %310 = vmatpush.msra.mxu0 %v289
        %311 = vmatpush.msra.mxu0 %v288
        %312 = vmatpush.msra.mxu0 %v287
        %313 = vmatpush.msra.mxu0 %v286
        %314 = vmatpush.msra.mxu0 %v285
        %315 = vmatpush.msra.mxu0 %v284
        %316 = vmatpush.msra.mxu0 %v283
        %317 = vmatpush.msra.mxu0 %v282
        %318 = vmatmul.f32.gmra.mxu0 %v280
        %v319 = vpop.f32.mrf.mxu0
        %v320 = vadd.f32 %v300, %v319
        %321 = vmatmul.f32.gmra.mxu0 %v281
        %v322 = vpop.f32.mrf.mxu0
        %v323 = vadd.f32 %v300, %v322
        %324 = vdwg.mxu0
        %325 = vst [vmem:[%s276] sm:$0xff] %v320
        %326 = vst [vmem:[%s276 + $0x8] sm:$0xff] %v323
        %s327 = sand.u32 %s134, 1
        %s328 = scalar_lea.sflag [#allocation4], %s327
        %s329 = sand.u32 %s134, 1
        %s330 = smul.addr %s329, 16
        %s331 = scalar_lea.vmem [#allocation8], %s330
        // Predicated region
        $region45: #{tpu_custom_call.1} parent=31 // pred_check
          %p332 = pneg %p144
        $region46: #{tpu_custom_call.1} parent=31 // pred_check_branch
          %334 = sbr.rel (%p332) target = $region48
        $region47: #{tpu_custom_call.1} parent=31 // pred_region
          %s335 = sadd.s32 %s26, %s28
          %s336 = smul.u32 2, %s27
          %338 = vsyncadd %s328, 0
          %s339 = smul.addr %s336, 2
          %s340 = sadd.s32 %s335, %s339
          %s341 = smul.addr %s340, 8
          %s342 = scalar_lea.hbm %s3, %s341
          %s343 = sshll.u32 %s331, 4
          %s344 = int_to_ptr.vmem [resolvable:$true] %s343
          %s345 = sshll.u32 %s342, 4
          %s346 = int_to_ptr.hbm [resolvable:$true] %s345
          %351 = dma.vmem_to_hbm [thread:$0]  %s344, 256, %s346, %s328, 128, 256, 8
        $region48: #{tpu_custom_call.1} parent=31 // pred_fallthru
          _
      $region32: #{tpu_custom_call.1} parent=5 // pred_fallthru
        _
      %p352 = scmp.le.s32.totalorder 2, %s16
      // Predicated region
      $region49: #{tpu_custom_call.1} parent=5 // pred_check
        %p353 = pneg %p352
      $region50: #{tpu_custom_call.1} parent=5 // pred_check_branch
        %355 = sbr.rel (%p353) target = $region52
      $region51: #{tpu_custom_call.1} parent=5 // pred_region
        %s356 = ssub.s32 %s16, 2
        // Predicated region
        $region53: #{tpu_custom_call.1} parent=51 // pred_check
          %p357 = pneg %p150
        $region54: #{tpu_custom_call.1} parent=51 // pred_check_branch
          %359 = sbr.rel (%p357) target = $region56
        $region55: #{tpu_custom_call.1} parent=51 // pred_region
          %s360 = sand.u32 %s135, 1
          %s361 = scalar_lea.sflag [#allocation4], %s360
          %s362 = sand.u32 %s135, 1
          %s363 = smul.addr %s362, 16
          %s364 = scalar_lea.vmem [#allocation8], %s363
          %366 = dma.done %s361, 256
        $region56: #{tpu_custom_call.1} parent=51 // pred_fallthru
          _
      $region52: #{tpu_custom_call.1} parent=5 // pred_fallthru
        _
    $region6: #{tpu_custom_call.1} parent=1 // loop_footer
      %s20 = sadd.s32 1, %s16
    $region7: #{tpu_custom_call.1} parent=1 // loop_footer_branch
      %15 = sbr.rel target = $region3
    $region8: #{tpu_custom_call.1} parent=1 // loop_exit
      _
    %367 = vsyncpa [#allocation3], 1
    %s368 = scalar_lea.sflag [#allocation3], 1
    %369 = vsyncpa %s368, 1
    %370 = vsyncpa [#allocation6], 1
    %s371 = scalar_lea.sflag [#allocation6], 1
    %372 = vsyncpa %s371, 1
    %373 = vsyncpa [#allocation4], 1
    %s374 = scalar_lea.sflag [#allocation4], 1
    %375 = vsyncpa %s374, 1

</llo_original>
